<compile_context>
chip_gen: v7x
topology: tpu7x:2x2x1
jax: 0.10.0
libtpu: 0.0.40
codegen_flags: <defaults>
</compile_context>

<pallas_src>
import functools

import jax
import jax.numpy as jnp
from jax import lax
from jax.experimental import pallas as pl
from jax.experimental.pallas import tpu as pltpu


def _conv_in_relu_kernel(x_ref, w_ref, b_ref, o_ref, xpad_ref, patches_ref,
                         *, H, W, C_in, C_out, eps):
    """One batch element per grid step.

    x_ref:       (1, C_in, H*W)        flattened NCHW input tile (lane axis = H*W)
    w_ref:       (C_out, 9*C_in)       conv weights, taps fused along K
    b_ref:       (C_out, 1)            conv bias (broadcasts over lanes)
    o_ref:       (1, C_out, H*W)       lane-dense output tile
    xpad_ref:    (C_in, H*W + 2*PAD)   VMEM scratch, zero lane-halo absorbs row over/underflow
    patches_ref: (9*C_in, H*W)         VMEM scratch: im2col patch matrix for the fused matmul
    """
    HW = H * W
    PAD = W + 1  # lane halo; covers tap offsets d = dy*W + dx in [-(W+1), W+1]

    # Stage the image into a lane-padded scratch. The zero halos make the
    # out-of-range *row* taps (dy = +-1 at the top/bottom edge) read zeros
    # automatically; out-of-range *column* taps are masked below.
    xpad_ref[:, :PAD] = jnp.zeros((C_in, PAD), jnp.float32)
    xpad_ref[:, PAD + HW:] = jnp.zeros((C_in, PAD), jnp.float32)
    xpad_ref[:, PAD:PAD + HW] = x_ref[0].astype(jnp.float32)

    # Column index of each output pixel (lane-resident iota).
    w_idx = lax.broadcasted_iota(jnp.int32, (1, HW), 1) % W

    # Build the (9*C_in, H*W) patch matrix: each 3x3 tap is a shifted lane-slice
    # of the padded image, masked at the left/right image border.
    for ky in range(3):
        for kx in range(3):
            dy, dx = ky - 1, kx - 1
            d = dy * W + dx
            tap = xpad_ref[:, PAD + d:PAD + d + HW]          # (C_in, HW)
            if dx == -1:
                tap = jnp.where(w_idx >= 1, tap, 0.0)        # w-1 out of range at w == 0
            elif dx == 1:
                tap = jnp.where(w_idx <= W - 2, tap, 0.0)    # w+1 out of range at w == W-1
            r = (ky * 3 + kx) * C_in
            patches_ref[r:r + C_in, :] = tap

    # Single fused MXU matmul: (C_out, 9*C_in) @ (9*C_in, H*W) -> (C_out, H*W).
    acc = jnp.dot(w_ref[...].astype(jnp.float32), patches_ref[...],
                  preferred_element_type=jnp.float32)
    acc = acc + b_ref[...].astype(jnp.float32)               # bias, broadcast over lanes

    # InstanceNorm2d (affine=False, biased variance) per channel over H*W (lane reduce).
    mean = jnp.mean(acc, axis=1, keepdims=True)
    centered = acc - mean
    var = jnp.mean(centered * centered, axis=1, keepdims=True)
    y = centered * lax.rsqrt(var + eps)

    # ReLU + lane-dense store.
    o_ref[0] = jnp.maximum(y, 0.0).astype(o_ref.dtype)


def single_net_forward(x_nchw, w_oihw, bias, *, eps=1e-5):
    """Equivalent of singleNet(i_channel, o_channel).forward(x), NCHW in / NCHW out."""
    N, C_in, H, W = x_nchw.shape
    C_out = w_oihw.shape[0]
    HW = H * W
    PAD = W + 1

    # Free reshapes / tiny weight reshuffle only (no activation transpose, no jnp.pad).
    x_flat = x_nchw.reshape(N, C_in, HW)                                   # (N, C_in, H*W)
    w2d = jnp.transpose(w_oihw, (0, 2, 3, 1)).reshape(C_out, 9 * C_in)     # (C_out, 9*C_in)
    b2 = bias.reshape(C_out, 1)

    kernel = functools.partial(
        _conv_in_relu_kernel, H=H, W=W, C_in=C_in, C_out=C_out, eps=eps
    )

    itemsize = jnp.dtype(x_nchw.dtype).itemsize
    cost = pl.CostEstimate(
        flops=2 * N * HW * 9 * C_in * C_out,
        transcendentals=N * C_out,  # rsqrt per (n, channel)
        bytes_accessed=itemsize * (N * C_in * HW + N * C_out * HW)
        + 4 * (C_out * 9 * C_in + C_out),
    )

    out_flat = pl.pallas_call(
        kernel,
        out_shape=jax.ShapeDtypeStruct((N, C_out, HW), x_nchw.dtype),
        grid_spec=pltpu.PrefetchScalarGridSpec(
            num_scalar_prefetch=0,
            grid=(N,),
            in_specs=[
                pl.BlockSpec((1, C_in, HW), lambda n: (n, 0, 0)),
                pl.BlockSpec((C_out, 9 * C_in), lambda n: (0, 0)),
                pl.BlockSpec((C_out, 1), lambda n: (0, 0)),
            ],
            out_specs=pl.BlockSpec((1, C_out, HW), lambda n: (n, 0, 0)),
            scratch_shapes=[
                pltpu.VMEM((C_in, HW + 2 * PAD), jnp.float32),   # lane-padded image
                pltpu.VMEM((9 * C_in, HW), jnp.float32),          # im2col patch matrix
            ],
        ),
        compiler_params=pltpu.CompilerParams(
            dimension_semantics=("parallel",),
            # Explicit scoped-VMEM budget (raises v5e's 16 MiB default; generous for
            # these shapes, re-derive when scaling H, W, C up — esp. for v7x).
            vmem_limit_bytes=32 * 1024 * 1024,
        ),
        cost_estimate=cost,
    )(x_flat, w2d, b2)

    # (N, C_out, H*W) -> (N, C_out, H, W): a free reshape, NOT a transpose.
    return out_flat.reshape(N, C_out, H, W)


def _reference(x_nchw, w_oihw, bias, eps=1e-5):
    conv = lax.conv_general_dilated(
        x_nchw, w_oihw, window_strides=(1, 1), padding=((1, 1), (1, 1)),
        dimension_numbers=("NCHW", "OIHW", "NCHW"),
    ) + bias[None, :, None, None]
    mean = conv.mean(axis=(2, 3), keepdims=True)
    var = conv.var(axis=(2, 3), keepdims=True)  # biased, like InstanceNorm2d
    return jnp.maximum((conv - mean) / jnp.sqrt(var + eps), 0.0)


if __name__ == "__main__":
    N, C_in, C_out, H, W = 2, 4, 8, 16, 16

    key = jax.random.PRNGKey(0)
    kx, kw, kb = jax.random.split(key, 3)

    x = jax.random.normal(kx, (N, C_in, H, W), jnp.float32)

    # Deterministic Conv2d-style init (kaiming-uniform-ish bounds).
    fan_in = C_in * 3 * 3
    bound = 1.0 / (fan_in ** 0.5)
    w = jax.random.uniform(kw, (C_out, C_in, 3, 3), jnp.float32, -bound, bound)
    b = jax.random.uniform(kb, (C_out,), jnp.float32, -bound, bound)

    out = single_net_forward(x, w, b)
    jax.block_until_ready(out)

    ref = _reference(x, w, b)
    assert out.shape == (N, C_out, H, W)
    assert jnp.allclose(out, ref, atol=2e-4, rtol=2e-4), "mismatch vs reference"

    print("KERNEL_OK")
</pallas_src>

<mosaic_0001>
module attributes {stable_mosaic.version = 11 : i64} {
  func.func @_conv_in_relu_kernel(%arg0: i32, %arg1: memref<1x4x256xf32, #tpu.memory_space<vmem>>, %arg2: memref<8x36xf32, #tpu.memory_space<vmem>>, %arg3: memref<8x1xf32, #tpu.memory_space<vmem>>, %arg4: memref<1x8x256xf32, #tpu.memory_space<vmem>>, %arg5: memref<4x290xf32, #tpu.memory_space<vmem>>, %arg6: memref<36x256xf32, #tpu.memory_space<vmem>>) attributes {dimension_semantics = [#tpu.dimension_semantics<parallel>], iteration_bounds = array<i64: 2>, scalar_prefetch = 0 : i64, scratch_operands = 2 : i64, tpu.core_type = #tpu.core_type<tc>, window_params = [{transform_indices = @transform_0, window_bounds = array<i64: 1, 4, 256>}, {pipeline_mode = #tpu.pipeline_mode<synchronous>, transform_indices = @transform_1, window_bounds = array<i64: 8, 36>}, {pipeline_mode = #tpu.pipeline_mode<synchronous>, transform_indices = @transform_2, window_bounds = array<i64: 8, 1>}, {transform_indices = @transform_3, window_bounds = array<i64: 1, 8, 256>}]} {
    %cst = arith.constant 0.000000e+00 : f32
    %0 = vector.broadcast %cst : f32 to vector<4x17xf32>
    %c0 = arith.constant 0 : index
    %c0_0 = arith.constant 0 : index
    %1 = vector.load %arg5[%c0, %c0_0] : memref<4x290xf32, #tpu.memory_space<vmem>>, vector<4x17xf32>
    tpu.vector_store %arg5[%c0, %c0_0], %0 {strides = array<i32>} : memref<4x290xf32, #tpu.memory_space<vmem>>, vector<4x17xf32>,
    %cst_1 = arith.constant 0.000000e+00 : f32
    %2 = vector.broadcast %cst_1 : f32 to vector<4x17xf32>
    %c0_2 = arith.constant 0 : index
    %c273 = arith.constant 273 : index
    %3 = vector.load %arg5[%c0_2, %c273] : memref<4x290xf32, #tpu.memory_space<vmem>>, vector<4x17xf32>
    tpu.vector_store %arg5[%c0_2, %c273], %2 {strides = array<i32>} : memref<4x290xf32, #tpu.memory_space<vmem>>, vector<4x17xf32>,
    %c0_3 = arith.constant 0 : index
    %c0_4 = arith.constant 0 : index
    %c0_5 = arith.constant 0 : index
    %4 = vector.load %arg1[%c0_3, %c0_4, %c0_5] : memref<1x4x256xf32, #tpu.memory_space<vmem>>, vector<1x4x256xf32>
    %5 = vector.shape_cast %4 : vector<1x4x256xf32> to vector<4x256xf32>
    %c0_6 = arith.constant 0 : index
    %c17 = arith.constant 17 : index
    %6 = vector.load %arg5[%c0_6, %c17] : memref<4x290xf32, #tpu.memory_space<vmem>>, vector<4x256xf32>
    tpu.vector_store %arg5[%c0_6, %c17], %5 {strides = array<i32>} : memref<4x290xf32, #tpu.memory_space<vmem>>, vector<4x256xf32>,
    %7 = tpu.iota {dimensions = array<i32: 1>} : vector<1x256xi32>
    %c16_i32 = arith.constant 16 : i32
    %c0_i32 = arith.constant 0 : i32
    %8 = arith.cmpi eq, %c16_i32, %c0_i32 : i32
    %c1_i32 = arith.constant 1 : i32
    %9 = arith.select %8, %c1_i32, %c16_i32 : i32
    %10 = vector.broadcast %9 : i32 to vector<1x256xi32>
    %11 = arith.remsi %7, %10 : vector<1x256xi32>
    %c0_i32_7 = arith.constant 0 : i32
    %12 = vector.broadcast %c0_i32_7 : i32 to vector<1x256xi32>
    %13 = arith.cmpi ne, %11, %12 : vector<1x256xi32>
    %c0_i32_8 = arith.constant 0 : i32
    %14 = vector.broadcast %c0_i32_8 : i32 to vector<1x256xi32>
    %15 = arith.cmpi slt, %11, %14 : vector<1x256xi32>
    %c0_i32_9 = arith.constant 0 : i32
    %16 = arith.cmpi slt, %9, %c0_i32_9 : i32
    %17 = vector.broadcast %16 : i1 to vector<1x256xi1>
    %18 = vector.broadcast %17 : vector<1x256xi1> to vector<1x256xi1>
    %19 = arith.xori %15, %18 : vector<1x256xi1>
    %20 = arith.andi %19, %13 : vector<1x256xi1>
    %21 = vector.broadcast %9 : i32 to vector<1x256xi32>
    %22 = arith.addi %11, %21 : vector<1x256xi32>
    %23 = arith.select %20, %22, %11 : vector<1x256xi1>, vector<1x256xi32>
    %c0_10 = arith.constant 0 : index
    %c0_11 = arith.constant 0 : index
    %24 = vector.load %arg5[%c0_10, %c0_11] : memref<4x290xf32, #tpu.memory_space<vmem>>, vector<4x256xf32>
    %c1_i32_12 = arith.constant 1 : i32
    %25 = vector.broadcast %c1_i32_12 : i32 to vector<1x256xi32>
    %26 = arith.cmpi sge, %23, %25 : vector<1x256xi32>
    %cst_13 = arith.constant 0.000000e+00 : f32
    %27 = vector.shape_cast %26 : vector<1x256xi1> to vector<1x256xi1>
    %28 = vector.broadcast %27 : vector<1x256xi1> to vector<4x256xi1>
    %29 = vector.broadcast %cst_13 : f32 to vector<4x256xf32>
    %30 = arith.select %28, %24, %29 : vector<4x256xi1>, vector<4x256xf32>
    %c0_14 = arith.constant 0 : index
    %c0_15 = arith.constant 0 : index
    %31 = vector.load %arg6[%c0_14, %c0_15] : memref<36x256xf32, #tpu.memory_space<vmem>>, vector<4x256xf32>
    tpu.vector_store %arg6[%c0_14, %c0_15], %30 {strides = array<i32>} : memref<36x256xf32, #tpu.memory_space<vmem>>, vector<4x256xf32>,
    %c0_16 = arith.constant 0 : index
    %c1 = arith.constant 1 : index
    %32 = vector.load %arg5[%c0_16, %c1] : memref<4x290xf32, #tpu.memory_space<vmem>>, vector<4x256xf32>
    %c4 = arith.constant 4 : index
    %c0_17 = arith.constant 0 : index
    %33 = vector.load %arg6[%c4, %c0_17] : memref<36x256xf32, #tpu.memory_space<vmem>>, vector<4x256xf32>
    tpu.vector_store %arg6[%c4, %c0_17], %32 {strides = array<i32>} : memref<36x256xf32, #tpu.memory_space<vmem>>, vector<4x256xf32>,
    %c0_18 = arith.constant 0 : index
    %c2 = arith.constant 2 : index
    %34 = vector.load %arg5[%c0_18, %c2] : memref<4x290xf32, #tpu.memory_space<vmem>>, vector<4x256xf32>
    %c14_i32 = arith.constant 14 : i32
    %35 = vector.broadcast %c14_i32 : i32 to vector<1x256xi32>
    %36 = arith.cmpi sle, %23, %35 : vector<1x256xi32>
    %cst_19 = arith.constant 0.000000e+00 : f32
    %37 = vector.shape_cast %36 : vector<1x256xi1> to vector<1x256xi1>
    %38 = vector.broadcast %37 : vector<1x256xi1> to vector<4x256xi1>
    %39 = vector.broadcast %cst_19 : f32 to vector<4x256xf32>
    %40 = arith.select %38, %34, %39 : vector<4x256xi1>, vector<4x256xf32>
    %c8 = arith.constant 8 : index
    %c0_20 = arith.constant 0 : index
    %41 = vector.load %arg6[%c8, %c0_20] : memref<36x256xf32, #tpu.memory_space<vmem>>, vector<4x256xf32>
    tpu.vector_store %arg6[%c8, %c0_20], %40 {strides = array<i32>} : memref<36x256xf32, #tpu.memory_space<vmem>>, vector<4x256xf32>,
    %c0_21 = arith.constant 0 : index
    %c16 = arith.constant 16 : index
    %42 = vector.load %arg5[%c0_21, %c16] : memref<4x290xf32, #tpu.memory_space<vmem>>, vector<4x256xf32>
    %c1_i32_22 = arith.constant 1 : i32
    %43 = vector.broadcast %c1_i32_22 : i32 to vector<1x256xi32>
    %44 = arith.cmpi sge, %23, %43 : vector<1x256xi32>
    %cst_23 = arith.constant 0.000000e+00 : f32
    %45 = vector.shape_cast %44 : vector<1x256xi1> to vector<1x256xi1>
    %46 = vector.broadcast %45 : vector<1x256xi1> to vector<4x256xi1>
    %47 = vector.broadcast %cst_23 : f32 to vector<4x256xf32>
    %48 = arith.select %46, %42, %47 : vector<4x256xi1>, vector<4x256xf32>
    %c12 = arith.constant 12 : index
    %c0_24 = arith.constant 0 : index
    %49 = vector.load %arg6[%c12, %c0_24] : memref<36x256xf32, #tpu.memory_space<vmem>>, vector<4x256xf32>
    tpu.vector_store %arg6[%c12, %c0_24], %48 {strides = array<i32>} : memref<36x256xf32, #tpu.memory_space<vmem>>, vector<4x256xf32>,
    %c0_25 = arith.constant 0 : index
    %c17_26 = arith.constant 17 : index
    %50 = vector.load %arg5[%c0_25, %c17_26] : memref<4x290xf32, #tpu.memory_space<vmem>>, vector<4x256xf32>
    %c16_27 = arith.constant 16 : index
    %c0_28 = arith.constant 0 : index
    %51 = vector.load %arg6[%c16_27, %c0_28] : memref<36x256xf32, #tpu.memory_space<vmem>>, vector<4x256xf32>
    tpu.vector_store %arg6[%c16_27, %c0_28], %50 {strides = array<i32>} : memref<36x256xf32, #tpu.memory_space<vmem>>, vector<4x256xf32>,
    %c0_29 = arith.constant 0 : index
    %c18 = arith.constant 18 : index
    %52 = vector.load %arg5[%c0_29, %c18] : memref<4x290xf32, #tpu.memory_space<vmem>>, vector<4x256xf32>
    %c14_i32_30 = arith.constant 14 : i32
    %53 = vector.broadcast %c14_i32_30 : i32 to vector<1x256xi32>
    %54 = arith.cmpi sle, %23, %53 : vector<1x256xi32>
    %cst_31 = arith.constant 0.000000e+00 : f32
    %55 = vector.shape_cast %54 : vector<1x256xi1> to vector<1x256xi1>
    %56 = vector.broadcast %55 : vector<1x256xi1> to vector<4x256xi1>
    %57 = vector.broadcast %cst_31 : f32 to vector<4x256xf32>
    %58 = arith.select %56, %52, %57 : vector<4x256xi1>, vector<4x256xf32>
    %c20 = arith.constant 20 : index
    %c0_32 = arith.constant 0 : index
    %59 = vector.load %arg6[%c20, %c0_32] : memref<36x256xf32, #tpu.memory_space<vmem>>, vector<4x256xf32>
    tpu.vector_store %arg6[%c20, %c0_32], %58 {strides = array<i32>} : memref<36x256xf32, #tpu.memory_space<vmem>>, vector<4x256xf32>,
    %c0_33 = arith.constant 0 : index
    %c32 = arith.constant 32 : index
    %60 = vector.load %arg5[%c0_33, %c32] : memref<4x290xf32, #tpu.memory_space<vmem>>, vector<4x256xf32>
    %c1_i32_34 = arith.constant 1 : i32
    %61 = vector.broadcast %c1_i32_34 : i32 to vector<1x256xi32>
    %62 = arith.cmpi sge, %23, %61 : vector<1x256xi32>
    %cst_35 = arith.constant 0.000000e+00 : f32
    %63 = vector.shape_cast %62 : vector<1x256xi1> to vector<1x256xi1>
    %64 = vector.broadcast %63 : vector<1x256xi1> to vector<4x256xi1>
    %65 = vector.broadcast %cst_35 : f32 to vector<4x256xf32>
    %66 = arith.select %64, %60, %65 : vector<4x256xi1>, vector<4x256xf32>
    %c24 = arith.constant 24 : index
    %c0_36 = arith.constant 0 : index
    %67 = vector.load %arg6[%c24, %c0_36] : memref<36x256xf32, #tpu.memory_space<vmem>>, vector<4x256xf32>
    tpu.vector_store %arg6[%c24, %c0_36], %66 {strides = array<i32>} : memref<36x256xf32, #tpu.memory_space<vmem>>, vector<4x256xf32>,
    %c0_37 = arith.constant 0 : index
    %c33 = arith.constant 33 : index
    %68 = vector.load %arg5[%c0_37, %c33] : memref<4x290xf32, #tpu.memory_space<vmem>>, vector<4x256xf32>
    %c28 = arith.constant 28 : index
    %c0_38 = arith.constant 0 : index
    %69 = vector.load %arg6[%c28, %c0_38] : memref<36x256xf32, #tpu.memory_space<vmem>>, vector<4x256xf32>
    tpu.vector_store %arg6[%c28, %c0_38], %68 {strides = array<i32>} : memref<36x256xf32, #tpu.memory_space<vmem>>, vector<4x256xf32>,
    %c0_39 = arith.constant 0 : index
    %c34 = arith.constant 34 : index
    %70 = vector.load %arg5[%c0_39, %c34] : memref<4x290xf32, #tpu.memory_space<vmem>>, vector<4x256xf32>
    %c14_i32_40 = arith.constant 14 : i32
    %71 = vector.broadcast %c14_i32_40 : i32 to vector<1x256xi32>
    %72 = arith.cmpi sle, %23, %71 : vector<1x256xi32>
    %cst_41 = arith.constant 0.000000e+00 : f32
    %73 = vector.shape_cast %72 : vector<1x256xi1> to vector<1x256xi1>
    %74 = vector.broadcast %73 : vector<1x256xi1> to vector<4x256xi1>
    %75 = vector.broadcast %cst_41 : f32 to vector<4x256xf32>
    %76 = arith.select %74, %70, %75 : vector<4x256xi1>, vector<4x256xf32>
    %c32_42 = arith.constant 32 : index
    %c0_43 = arith.constant 0 : index
    %77 = vector.load %arg6[%c32_42, %c0_43] : memref<36x256xf32, #tpu.memory_space<vmem>>, vector<4x256xf32>
    tpu.vector_store %arg6[%c32_42, %c0_43], %76 {strides = array<i32>} : memref<36x256xf32, #tpu.memory_space<vmem>>, vector<4x256xf32>,
    %c0_44 = arith.constant 0 : index
    %c0_45 = arith.constant 0 : index
    %78 = vector.load %arg2[%c0_44, %c0_45] : memref<8x36xf32, #tpu.memory_space<vmem>>, vector<8x36xf32>
    %c0_46 = arith.constant 0 : index
    %c0_47 = arith.constant 0 : index
    %79 = vector.load %arg6[%c0_46, %c0_47] : memref<36x256xf32, #tpu.memory_space<vmem>>, vector<36x256xf32>
    %cst_48 = arith.constant dense<0.000000e+00> : vector<8x256xf32>
    %80 = tpu.matmul %78, %79, %cst_48 {dimension_numbers = #tpu.dot_dimension_numbers<[1], [0], [0], [1], [0, 0, 1, 1], [], []>} : vector<8x36xf32>, vector<36x256xf32>, vector<8x256xf32> -> vector<8x256xf32>
    %c0_49 = arith.constant 0 : index
    %c0_50 = arith.constant 0 : index
    %81 = vector.load %arg3[%c0_49, %c0_50] : memref<8x1xf32, #tpu.memory_space<vmem>>, vector<8x1xf32>
    %82 = vector.broadcast %81 : vector<8x1xf32> to vector<8x256xf32>
    %83 = arith.addf %80, %82 : vector<8x256xf32>
    %cst_51 = arith.constant dense<0.000000e+00> : vector<8xf32>
    %84 = vector.multi_reduction <add>, %83, %cst_51 [1] : vector<8x256xf32> to vector<8xf32>
    %85 = vector.shape_cast %84 : vector<8xf32> to vector<8x1xf32>
    %cst_52 = arith.constant 2.560000e+02 : f32
    %86 = vector.broadcast %cst_52 : f32 to vector<8x1xf32>
    %87 = arith.divf %85, %86 : vector<8x1xf32>
    %88 = vector.broadcast %87 : vector<8x1xf32> to vector<8x256xf32>
    %89 = arith.subf %83, %88 : vector<8x256xf32>
    %90 = arith.mulf %89, %89 : vector<8x256xf32>
    %cst_53 = arith.constant dense<0.000000e+00> : vector<8xf32>
    %91 = vector.multi_reduction <add>, %90, %cst_53 [1] : vector<8x256xf32> to vector<8xf32>
    %92 = vector.shape_cast %91 : vector<8xf32> to vector<8x1xf32>
    %cst_54 = arith.constant 2.560000e+02 : f32
    %93 = vector.broadcast %cst_54 : f32 to vector<8x1xf32>
    %94 = arith.divf %92, %93 : vector<8x1xf32>
    %cst_55 = arith.constant 9.99999974E-6 : f32
    %95 = vector.broadcast %cst_55 : f32 to vector<8x1xf32>
    %96 = arith.addf %94, %95 : vector<8x1xf32>
    %97 = math.rsqrt %96 : vector<8x1xf32>
    %98 = vector.broadcast %97 : vector<8x1xf32> to vector<8x256xf32>
    %99 = arith.mulf %89, %98 : vector<8x256xf32>
    %cst_56 = arith.constant 0.000000e+00 : f32
    %100 = vector.broadcast %cst_56 : f32 to vector<8x256xf32>
    %101 = arith.maximumf %99, %100 : vector<8x256xf32>
    %c0_57 = arith.constant 0 : index
    %c0_58 = arith.constant 0 : index
    %c0_59 = arith.constant 0 : index
    %102 = vector.load %arg4[%c0_57, %c0_58, %c0_59] : memref<1x8x256xf32, #tpu.memory_space<vmem>>, vector<1x8x256xf32>
    %103 = vector.shape_cast %102 : vector<1x8x256xf32> to vector<8x256xf32>
    %104 = vector.shape_cast %101 : vector<8x256xf32> to vector<1x8x256xf32>
    tpu.vector_store %arg4[%c0_57, %c0_58, %c0_59], %104 {strides = array<i32>} : memref<1x8x256xf32, #tpu.memory_space<vmem>>, vector<1x8x256xf32>,
    return
  }
  func.func @transform_0(%arg0: i32) -> (i32, i32, i32) {
    %c0_i32 = arith.constant 0 : i32
    %c0_i32_0 = arith.constant 0 : i32
    %c0_i32_1 = arith.constant 0 : i32
    return %arg0, %c0_i32, %c0_i32_0 : i32, i32, i32
  }
  func.func @transform_1(%arg0: i32) -> (i32, i32) {
    %c0_i32 = arith.constant 0 : i32
    %c0_i32_0 = arith.constant 0 : i32
    %c0_i32_1 = arith.constant 0 : i32
    return %c0_i32, %c0_i32_0 : i32, i32
  }
  func.func @transform_2(%arg0: i32) -> (i32, i32) {
    %c0_i32 = arith.constant 0 : i32
    %c0_i32_0 = arith.constant 0 : i32
    %c0_i32_1 = arith.constant 0 : i32
    return %c0_i32, %c0_i32_0 : i32, i32
  }
  func.func @transform_3(%arg0: i32) -> (i32, i32, i32) {
    %c0_i32 = arith.constant 0 : i32
    %c0_i32_0 = arith.constant 0 : i32
    %c0_i32_1 = arith.constant 0 : i32
    return %arg0, %c0_i32, %c0_i32_0 : i32, i32, i32
  }
}

</mosaic_0001>

<llo_original>
// kernel: tpu_custom_call.1
$region0: #{tpu_custom_call.1}
  #allocation0 [shape = 'u32[]', space=smem, size = 0x4, offset = 0x4, fixed_abs, tag = 'smem constant byte address 0x4 - core index']
  #allocation1 [shape = 'u32[144,128]{1,0:T(1,128)}', space=vmem, size = 0x12000, scoped, tag = 'internal scratch']
  #allocation2 [shape = 'f32[4,290]{1,0:T(4,128)}', space=vmem, size = 0x1800, scoped, tag = 'scratch operand']
  #allocation3 [shape = 'f32[36,256]{1,0:T(8,128)}', space=vmem, size = 0xa000, scoped, tag = 'scratch operand']
  %s0 = inlined_call_operand.hbm [shape: f32[2,4,256], index: 0, kind: input, shape index: {}]
  %s1 = inlined_call_operand.vmem [shape: f32[8,36], index: 1, kind: input, shape index: {}]
  %s2 = inlined_call_operand.vmem [shape: f32[8,1], index: 2, kind: input, shape index: {}]
  %s3 = inlined_call_operand.hbm [shape: f32[2,8,256], index: 3, kind: output, shape index: {}]
  %s4 = sld [smem:[#allocation0]]
  $region49: #{tpu_custom_call.1} parent=0
    _
  %s6 = ssub.s32 1, %s4
  %s7 = scalar_select 0, %s6, %s4
  $region1: #{tpu_custom_call.1} parent=0
    #allocation4 [shape = 'u8[8192]{0}', space=vmem, size = 0x2000, scoped, tag = 'input window, operand 0']
    #allocation5 [shape = 's32[2]{0}', space=sflag, size = 0x8, scoped, tag = 'scoped memory for tpu_custom_call.1']
    #allocation6 [shape = 's32[2]{0}', space=sflag, size = 0x8, scoped, tag = 'scoped memory for tpu_custom_call.1']
    #allocation7 [shape = 'u8[16384]{0}', space=vmem, size = 0x4000, scoped, tag = 'output window, operand 0']
    %8 = vsyncpa [#allocation5], 0
    %s9 = scalar_lea.sflag [#allocation5], 1
    %10 = vsyncpa %s9, 0
    %11 = vsyncpa [#allocation6], 0
    %s12 = scalar_lea.sflag [#allocation6], 1
    %13 = vsyncpa %s12, 0
    loop: start=0, step=1, limit=4
    $region2: #{tpu_custom_call.1} parent=1 // loop_pre_header
      _
    $region3: #{tpu_custom_call.1} parent=1 // loop_header
      %s15 = sphi 0, %s19
      %p16 = scmp.ge.s32.totalorder %s15, 4
      %s25 = sphi 0, %s27
      %s28 = sphi 0, %s25
      %s29 = sphi 0, %s28
      %s45 = sphi 0, %s29
      %s49 = sphi 0, %s49
      %s51 = sphi 0, %s49
      %s52 = sphi 0, %s51
      %s66 = sphi 0, %s52
      %s70 = sphi 0, %s70
      %s72 = sphi 0, %s70
      %s73 = sphi 0, %s72
      %s87 = sphi 0, %s73
      %s93 = sphi 0, %s95
      %s96 = sphi 0, %s93
      %s97 = sphi 0, %s96
      %s113 = sphi 0, %s97
    $region4: #{tpu_custom_call.1} parent=1 // loop_header_branch
      %18 = sbr.rel (%p16) target = $region8
    $region5: #{tpu_custom_call.1} parent=1 // loop_body
      %s20 = ssub.s32 %s15, 1
      %s21 = ssub.s32 %s15, 2
      %s22 = sadd.s32 %s15, 1
      %s23 = ssub.s32 %s15, %s22
      %p24 = scmp.eq.s32.totalorder %s23, 0
      %s26 = sadd.s32 %s25, 1
      %s27 = scalar_select %p24, %s25, %s26
      %p30 = pneg %p24
      %p31 = scmp.eq.s32.totalorder %s15, 1
      %p32 = por %p30, %p31
      %p33 = scmp.ne.s32.totalorder %s25, %s28
      %p34 = scmp.eq.s32.totalorder %s15, 0
      %p35 = por %p33, %p34
      %p36 = scmp.ne.s32.totalorder %s25, %s28
      %p37 = scmp.eq.s32.totalorder %s20, 1
      %p38 = por %p36, %p37
      %p39 = scmp.ne.s32.totalorder %s28, %s29
      %p40 = scmp.eq.s32.totalorder %s20, 0
      %p41 = por %p39, %p40
      %p42 = scmp.ne.s32.totalorder %s28, %s29
      %p43 = scmp.eq.s32.totalorder %s21, 1
      %p44 = por %p42, %p43
      %p46 = scmp.ne.s32.totalorder %s29, %s45
      %p47 = scmp.eq.s32.totalorder %s21, 0
      %p48 = por %p46, %p47
      %s50 = sadd.s32 %s49, 1
      %p53 = scmp.eq.s32.totalorder %s15, 1
      %p54 = scmp.ne.s32.totalorder %s49, %s51
      %p55 = scmp.eq.s32.totalorder %s15, 0
      %p56 = por %p54, %p55
      %p57 = scmp.ne.s32.totalorder %s49, %s51
      %p58 = scmp.eq.s32.totalorder %s20, 1
      %p59 = por %p57, %p58
      %p60 = scmp.ne.s32.totalorder %s51, %s52
      %p61 = scmp.eq.s32.totalorder %s20, 0
      %p62 = por %p60, %p61
      %p63 = scmp.ne.s32.totalorder %s51, %s52
      %p64 = scmp.eq.s32.totalorder %s21, 1
      %p65 = por %p63, %p64
      %p67 = scmp.ne.s32.totalorder %s52, %s66
      %p68 = scmp.eq.s32.totalorder %s21, 0
      %p69 = por %p67, %p68
      %s71 = sadd.s32 %s70, 1
      %p74 = scmp.eq.s32.totalorder %s15, 1
      %p75 = scmp.ne.s32.totalorder %s70, %s72
      %p76 = scmp.eq.s32.totalorder %s15, 0
      %p77 = por %p75, %p76
      %p78 = scmp.ne.s32.totalorder %s70, %s72
      %p79 = scmp.eq.s32.totalorder %s20, 1
      %p80 = por %p78, %p79
      %p81 = scmp.ne.s32.totalorder %s72, %s73
      %p82 = scmp.eq.s32.totalorder %s20, 0
      %p83 = por %p81, %p82
      %p84 = scmp.ne.s32.totalorder %s72, %s73
      %p85 = scmp.eq.s32.totalorder %s21, 1
      %p86 = por %p84, %p85
      %p88 = scmp.ne.s32.totalorder %s73, %s87
      %p89 = scmp.eq.s32.totalorder %s21, 0
      %p90 = por %p88, %p89
      %s91 = ssub.s32 %s15, %s22
      %p92 = scmp.eq.s32.totalorder %s91, 0
      %s94 = sadd.s32 %s93, 1
      %s95 = scalar_select %p92, %s93, %s94
      %p98 = pneg %p92
      %p99 = scmp.eq.s32.totalorder %s15, 1
      %p100 = por %p98, %p99
      %p101 = scmp.ne.s32.totalorder %s93, %s96
      %p102 = scmp.eq.s32.totalorder %s15, 0
      %p103 = por %p101, %p102
      %p104 = scmp.ne.s32.totalorder %s93, %s96
      %p105 = scmp.eq.s32.totalorder %s20, 1
      %p106 = por %p104, %p105
      %p107 = scmp.ne.s32.totalorder %s96, %s97
      %p108 = scmp.eq.s32.totalorder %s20, 0
      %p109 = por %p107, %p108
      %p110 = scmp.ne.s32.totalorder %s96, %s97
      %p111 = scmp.eq.s32.totalorder %s21, 1
      %p112 = por %p110, %p111
      %p114 = scmp.ne.s32.totalorder %s97, %s113
      %p115 = scmp.eq.s32.totalorder %s21, 0
      %p116 = por %p114, %p115
      %p117 = scmp.le.s32.totalorder 1, %s15
      %p118 = scmp.lt.s32.totalorder %s15, 3
      %p119 = pnand %p117, %p118
      %p120 = pneg %p119
      // Predicated region
      $region9: #{tpu_custom_call.1} parent=5 // pred_check
        _
      $region10: #{tpu_custom_call.1} parent=5 // pred_check_branch
        %122 = sbr.rel (%p119) target = $region12
      $region11: #{tpu_custom_call.1} parent=5 // pred_region
        %s123 = ssub.s32 %s15, 1
        // Predicated region
        $region13: #{tpu_custom_call.1} parent=11 // pred_check
          %p124 = pneg %p62
        $region14: #{tpu_custom_call.1} parent=11 // pred_check_branch
          %126 = sbr.rel (%p124) target = $region16
        $region15: #{tpu_custom_call.1} parent=11 // pred_region
          _
        $region16: #{tpu_custom_call.1} parent=11 // pred_fallthru
          _
        // Predicated region
        $region17: #{tpu_custom_call.1} parent=11 // pred_check
          %p127 = pneg %p83
        $region18: #{tpu_custom_call.1} parent=11 // pred_check_branch
          %129 = sbr.rel (%p127) target = $region20
        $region19: #{tpu_custom_call.1} parent=11 // pred_region
          _
        $region20: #{tpu_custom_call.1} parent=11 // pred_fallthru
          _
      $region12: #{tpu_custom_call.1} parent=5 // pred_fallthru
        _
      %p130 = scmp.lt.s32.totalorder %s15, 2
      // Predicated region
      $region21: #{tpu_custom_call.1} parent=5 // pred_check
        %p131 = pneg %p130
      $region22: #{tpu_custom_call.1} parent=5 // pred_check_branch
        %133 = sbr.rel (%p131) target = $region24
      $region23: #{tpu_custom_call.1} parent=5 // pred_region
        // Predicated region
        $region25: #{tpu_custom_call.1} parent=23 // pred_check
          %p134 = pneg %p35
        $region26: #{tpu_custom_call.1} parent=23 // pred_check_branch
          %136 = sbr.rel (%p134) target = $region28
        $region27: #{tpu_custom_call.1} parent=23 // pred_region
          %s137 = sand.u32 %s25, 1
          %s138 = scalar_lea.sflag [#allocation5], %s137
          %s139 = sand.u32 %s25, 1
          %s140 = smul.addr %s139, 8
          %s141 = scalar_lea.vmem [#allocation4], %s140
          %s143 = ssub.s32 128, 128
          %144 = vsyncadd %s138, %s143
          %s145 = smul.addr %s15, 2
          %s146 = smul.addr %s145, 64
          %s147 = scalar_lea.hbm %s0, %s146
          %s149 = sshll.u32 %s141, 4
          %s150 = int_to_ptr.vmem [resolvable:$true] %s149
          %152 = dma.hbm_to_vmem [thread:$0]  %s147, 128, %s150, %s138
        $region28: #{tpu_custom_call.1} parent=23 // pred_fallthru
          _
      $region24: #{tpu_custom_call.1} parent=5 // pred_fallthru
        _
      %p153 = scmp.le.s32.totalorder 1, %s15
      %p154 = scmp.lt.s32.totalorder %s15, 3
      %p155 = pnand %p153, %p154
      %p156 = pneg %p155
      // Predicated region
      $region29: #{tpu_custom_call.1} parent=5 // pred_check
        _
      $region30: #{tpu_custom_call.1} parent=5 // pred_check_branch
        %158 = sbr.rel (%p155) target = $region32
      $region31: #{tpu_custom_call.1} parent=5 // pred_region
        %s159 = ssub.s32 %s15, 1
        %s160 = sand.u32 %s28, 1
        %s161 = scalar_lea.sflag [#allocation5], %s160
        %s162 = sand.u32 %s28, 1
        %s163 = smul.addr %s162, 8
        %s164 = scalar_lea.vmem [#allocation4], %s163
        // Predicated region
        $region33: #{tpu_custom_call.1} parent=31 // pred_check
          %p165 = pneg %p41
        $region34: #{tpu_custom_call.1} parent=31 // pred_check_branch
          %167 = sbr.rel (%p165) target = $region36
        $region35: #{tpu_custom_call.1} parent=31 // pred_region
          %168 = dma.done %s161, 128
        $region36: #{tpu_custom_call.1} parent=31 // pred_fallthru
          _
        %s169 = sand.u32 %s28, 1
        %s170 = scalar_lea.sflag [#allocation5], %s169
        %s171 = sand.u32 %s28, 1
        %s172 = smul.addr %s171, 8
        %s173 = scalar_lea.vmem [#allocation4], %s172
        %p174 = pneg %p41
        %p175 = pneg %p38
        %p176 = pneg %p62
        %p177 = pneg %p59
        %p178 = pneg %p83
        %p179 = pneg %p80
        %p180 = pneg %p109
        %p181 = pneg %p106
        %s182 = sand.u32 %s96, 1
        %s183 = scalar_lea.sflag [#allocation6], %s182
        %s184 = sand.u32 %s96, 1
        %s185 = smul.addr %s184, 16
        %s186 = scalar_lea.vmem [#allocation7], %s185
        %vm187 = vcmask 134144
        %188 = vst.msk [vmem:[#allocation2] sm:$0xf] %vm187, 0.0
        %vm189 = vcmask 273544
        %190 = vst.msk [vmem:[#allocation2 + $0x8] sm:$0xf] %vm189, 0.0
        %v191 = vld [vmem:[%s164] sm:$0xff]
        %193 = vrot.lane.b32.xlu0 %v191, 17
        %v194 = vpop.permute.xlu0 %193
        %v195 = vrot.slane %v194, 4
        %vm196 = vcmask 138240
        %v197 = vsel %vm196, %v195, %v194
        %vm200 = vcmask 1043592
        %vm201 = vcmask 1047556
        %vm202 = vmor %vm201, %vm200
        %203 = vst.msk [vmem:[#allocation2] sm:$0xff] %vm202, %v197
        %204 = vst.msk [vmem:[#allocation2 + $0x8] sm:$0xf] %vm187, %v195
        %v205 = vlaneseq
        %v206 = vand.u32 %v205, 127
        %v207 = vadd.s32 %v206, 128
        %vm208 = vcmp.lt.s32.totalorder %v206, 0
        %v209 = vsub.s32 0, %v206
        %v210 = vsel %vm208, %v209, %v206
        %v211 = vshrl.u32 %v210, 4
        %v212 = vand.u32 %v210, 15
        %v213 = vsub.s32 0, %v212
        %v214 = vsel %vm208, %v213, %v212
        %vm215 = vcmp.lt.s32.totalorder %v207, 0
        %v216 = vsub.s32 0, %v207
        %v217 = vsel %vm215, %v216, %v207
        %v218 = vshrl.u32 %v217, 4
        %v219 = vand.u32 %v217, 15
        %v220 = vsub.s32 0, %v219
        %v221 = vsel %vm215, %v220, %v219
        %vm222 = vcmp.ne.s32.totalorder %v214, 0
        %vm223 = vcmp.ne.s32.totalorder %v221, 0
        %vm224 = vcmp.lt.s32.totalorder %v214, 0
        %vm225 = vcmp.lt.s32.totalorder %v221, 0
        %vm226 = vmand %vm224, %vm222
        %vm227 = vmand %vm225, %vm223
        %v228 = vadd.s32 %v214, 16
        %v229 = vadd.s32 %v221, 16
        %v230 = vsel %vm226, %v228, %v214
        %v231 = vsel %vm227, %v229, %v221
        %v232 = vld [vmem:[#allocation2] sm:$0xff]
        %vm233 = vcmp.ge.s32.totalorder %v230, 1
        %vm234 = vcmp.ge.s32.totalorder %v231, 1
        %v235 = vsel %vm233, 1, 0
        %v236 = vsel %vm234, 1, 0
        %vm237 = vcmp.eq.s32.totalorder %v235, 1
        %vm238 = vcmp.eq.s32.totalorder %v236, 1
        %v240 = vcombine.high %v232, %v232
        %v242 = vsel %vm237, %v232, 0.0
        %v243 = vsel %vm238, %v240, 0.0
        %244 = vst [vmem:[#allocation3] sm:$0xf] %v242
        %245 = vst [vmem:[#allocation3 + $0x8] sm:$0xf] %v243
        %v246 = vld [vmem:[#allocation2] sm:$0xff]
        %v247 = vld [vmem:[#allocation2 + $0x8] sm:$0xf]
        %v250 = vcombine.low %v246, %v246
        %v251 = vcombine.low %v247, %v247
        %252 = vrot.lane.b32.xlu0 %v250, 127
        %v253 = vpop.permute.xlu0 %252
        %254 = vrot.lane.b32.xlu0 %v246, 127
        %v255 = vpop.permute.xlu0 %254
        %256 = vrot.lane.b32.xlu0 %v251, 127
        %v257 = vpop.permute.xlu0 %256
        %vm258 = vcmask 1039360
        %v259 = vsel %vm258, %v253, %v255
        %v260 = vsel %vm258, %v255, %v257
        %263 = vst [vmem:[#allocation3] sm:$0xf0] %v259
        %264 = vst [vmem:[#allocation3 + $0x8] sm:$0xf0] %v260
        %v265 = vld [vmem:[#allocation2] sm:$0xff]
        %v266 = vld [vmem:[#allocation2 + $0x8] sm:$0xf]
        %vm267 = vcmp.le.s32.totalorder %v230, 14
        %vm268 = vcmp.le.s32.totalorder %v231, 14
        %v269 = vsel %vm267, 1, 0
        %v270 = vsel %vm268, 1, 0
        %vm271 = vcmp.eq.s32.totalorder %v269, 1
        %vm272 = vcmp.eq.s32.totalorder %v270, 1
        %v275 = vcombine.high %v265, %v265
        %276 = vrot.lane.b32.xlu0 %v265, 126
        %v277 = vpop.permute.xlu0 %276
        %278 = vrot.lane.b32.xlu0 %v275, 126
        %v279 = vpop.permute.xlu0 %278
        %280 = vrot.lane.b32.xlu0 %v266, 126
        %v281 = vpop.permute.xlu0 %280
        %vm282 = vcmask 1031168
        %v283 = vsel %vm282, %v277, %v279
        %v284 = vsel %vm282, %v279, %v281
        %v287 = vsel %vm271, %v283, 0.0
        %v288 = vsel %vm272, %v284, 0.0
        %289 = vst [vmem:[#allocation3 + $0x10] sm:$0xf] %v287
        %290 = vst [vmem:[#allocation3 + $0x18] sm:$0xf] %v288
        %v291 = vld [vmem:[#allocation2] sm:$0xff]
        %v292 = vld [vmem:[#allocation2 + $0x8] sm:$0xf]
        %v295 = vcombine.high %v291, %v291
        %296 = vrot.lane.b32.xlu0 %v291, 112
        %v297 = vpop.permute.xlu0 %296
        %298 = vrot.lane.b32.xlu0 %v295, 112
        %v299 = vpop.permute.xlu0 %298
        %300 = vrot.lane.b32.xlu0 %v292, 112
        %v301 = vpop.permute.xlu0 %300
        %vm302 = vcmask 916480
        %v303 = vsel %vm302, %v297, %v299
        %v304 = vsel %vm302, %v299, %v301
        %v307 = vsel %vm237, %v303, 0.0
        %v308 = vsel %vm238, %v304, 0.0
        %v311 = vrot.slane %v307, 4
        %v312 = vrot.slane %v308, 4
        %315 = vst [vmem:[#allocation3 + $0x10] sm:$0xf0] %v311
        %316 = vst [vmem:[#allocation3 + $0x18] sm:$0xf0] %v312
        %v317 = vld [vmem:[#allocation2] sm:$0xff]
        %v318 = vld [vmem:[#allocation2 + $0x8] sm:$0xf]
        %v321 = vcombine.high %v317, %v317
        %322 = vrot.lane.b32.xlu0 %v317, 111
        %v323 = vpop.permute.xlu0 %322
        %324 = vrot.lane.b32.xlu0 %v321, 111
        %v325 = vpop.permute.xlu0 %324
        %326 = vrot.lane.b32.xlu0 %v318, 111
        %v327 = vpop.permute.xlu0 %326
        %vm328 = vcmask 908288
        %v329 = vsel %vm328, %v323, %v325
        %v330 = vsel %vm328, %v325, %v327
        %333 = vst [vmem:[#allocation3 + $0x20] sm:$0xf] %v329
        %334 = vst [vmem:[#allocation3 + $0x28] sm:$0xf] %v330
        %v335 = vld [vmem:[#allocation2] sm:$0xff]
        %v336 = vld [vmem:[#allocation2 + $0x8] sm:$0xf]
        %v339 = vcombine.high %v335, %v335
        %340 = vrot.lane.b32.xlu0 %v335, 110
        %v341 = vpop.permute.xlu0 %340
        %342 = vrot.lane.b32.xlu0 %v339, 110
        %v343 = vpop.permute.xlu0 %342
        %344 = vrot.lane.b32.xlu0 %v336, 110
        %v345 = vpop.permute.xlu0 %344
        %vm346 = vcmask 900096
        %v347 = vsel %vm346, %v341, %v343
        %v348 = vsel %vm346, %v343, %v345
        %v351 = vsel %vm271, %v347, 0.0
        %v352 = vsel %vm272, %v348, 0.0
        %v355 = vrot.slane %v351, 4
        %v356 = vrot.slane %v352, 4
        %359 = vst [vmem:[#allocation3 + $0x20] sm:$0xf0] %v355
        %360 = vst [vmem:[#allocation3 + $0x28] sm:$0xf0] %v356
        %v361 = vld [vmem:[#allocation2] sm:$0xff]
        %v362 = vld [vmem:[#allocation2 + $0x8] sm:$0xf]
        %v365 = vcombine.high %v361, %v361
        %366 = vrot.lane.b32.xlu0 %v361, 96
        %v367 = vpop.permute.xlu0 %366
        %368 = vrot.lane.b32.xlu0 %v365, 96
        %v369 = vpop.permute.xlu0 %368
        %370 = vrot.lane.b32.xlu0 %v362, 96
        %v371 = vpop.permute.xlu0 %370
        %vm372 = vcmask 785408
        %v373 = vsel %vm372, %v367, %v369
        %v374 = vsel %vm372, %v369, %v371
        %v377 = vsel %vm237, %v373, 0.0
        %v378 = vsel %vm238, %v374, 0.0
        %379 = vst [vmem:[#allocation3 + $0x30] sm:$0xf] %v377
        %380 = vst [vmem:[#allocation3 + $0x38] sm:$0xf] %v378
        %v381 = vld [vmem:[#allocation2] sm:$0xff]
        %v382 = vld [vmem:[#allocation2 + $0x8] sm:$0xf]
        %v385 = vcombine.low %v381, %v381
        %v386 = vcombine.low %v382, %v382
        %387 = vrot.lane.b32.xlu0 %v385, 95
        %v388 = vpop.permute.xlu0 %387
        %389 = vrot.lane.b32.xlu0 %v381, 95
        %v390 = vpop.permute.xlu0 %389
        %391 = vrot.lane.b32.xlu0 %v386, 95
        %v392 = vpop.permute.xlu0 %391
        %vm393 = vcmask 777216
        %v394 = vsel %vm393, %v388, %v390
        %v395 = vsel %vm393, %v390, %v392
        %398 = vst [vmem:[#allocation3 + $0x30] sm:$0xf0] %v394
        %399 = vst [vmem:[#allocation3 + $0x38] sm:$0xf0] %v395
        %v400 = vld [vmem:[#allocation2] sm:$0xff]
        %v401 = vld [vmem:[#allocation2 + $0x8] sm:$0xf]
        %v404 = vcombine.high %v400, %v400
        %405 = vrot.lane.b32.xlu0 %v400, 94
        %v406 = vpop.permute.xlu0 %405
        %407 = vrot.lane.b32.xlu0 %v404, 94
        %v408 = vpop.permute.xlu0 %407
        %409 = vrot.lane.b32.xlu0 %v401, 94
        %v410 = vpop.permute.xlu0 %409
        %vm411 = vcmask 769024
        %v412 = vsel %vm411, %v406, %v408
        %v413 = vsel %vm411, %v408, %v410
        %v416 = vsel %vm271, %v412, 0.0
        %v417 = vsel %vm272, %v413, 0.0
        %418 = vst [vmem:[#allocation3 + $0x40] sm:$0xf] %v416
        %419 = vst [vmem:[#allocation3 + $0x48] sm:$0xf] %v417
        %v420 = vld [vmem:[%s1] sm:$0xff]
        %v421 = vld [vmem:[#allocation3] sm:$0xff]
        %v422 = vld [vmem:[#allocation3 + $0x8] sm:$0xff]
        %v423 = vld [vmem:[#allocation3 + $0x10] sm:$0xff]
        %v424 = vld [vmem:[#allocation3 + $0x18] sm:$0xff]
        %v425 = vld [vmem:[#allocation3 + $0x20] sm:$0xff]
        %v426 = vld [vmem:[#allocation3 + $0x28] sm:$0xff]
        %v427 = vld [vmem:[#allocation3 + $0x30] sm:$0xff]
        %v428 = vld [vmem:[#allocation3 + $0x38] sm:$0xff]
        %v429 = vld [vmem:[#allocation3 + $0x40] sm:$0xf]
        %v430 = vld [vmem:[#allocation3 + $0x48] sm:$0xf]
        %v431 = vld [vmem:[%s2] sm:$0xff]
        %433 = vset.pattern.permute.xlu0 0
        %434 = vperm.xlu0 %433, %v431
        %v435 = vpop.permute.xlu0 %434
        %vm437 = vcmask 293888
        %v439 = vsel %vm437, %v420, 0
        %vm441 = vcmask 1043456
        %v443 = vsel %vm441, %v429, 0
        %v446 = vsel %vm441, %v430, 0
        %448 = vmatprep.subr.mxu0 %v422
        %449 = vmatpush1.msra.mxu0 %v421
        %450 = vmatprep.subr.mxu0 %v424
        %451 = vmatpush1.msra.mxu0 %v423
        %452 = vmatprep.subr.mxu0 %v426
        %453 = vmatpush1.msra.mxu0 %v425
        %454 = vmatprep.subr.mxu0 %v428
        %455 = vmatpush1.msra.mxu0 %v427
        %456 = vmatprep.subr.mxu0 %v446
        %457 = vmatpush1.msra.mxu0 %v443
        %458 = vmatprep.subr.mxu0 0.0
        %459 = vmatpush1.msra.mxu0 0.0
        %460 = vmatprep.subr.mxu0 0.0
        %461 = vmatpush1.msra.mxu0 0.0
        %462 = vmatprep.subr.mxu0 0.0
        %463 = vmatpush1.msra.mxu0 0.0
        %464 = vmatprep.subr.mxu0 0.0
        %465 = vmatpush1.msra.mxu0 0.0
        %466 = vmatprep.subr.mxu0 0.0
        %467 = vmatpush1.msra.mxu0 0.0
        %468 = vmatprep.subr.mxu0 0.0
        %469 = vmatpush1.msra.mxu0 0.0
        %470 = vmatprep.subr.mxu0 0.0
        %471 = vmatpush1.msra.mxu0 0.0
        %472 = vmatprep.subr.mxu0 0.0
        %473 = vmatpush1.msra.mxu0 0.0
        %474 = vmatprep.subr.mxu0 0.0
        %475 = vmatpush1.msra.mxu0 0.0
        %476 = vmatprep.subr.mxu0 0.0
        %477 = vmatpush1.msra.mxu0 0.0
        %478 = vmatprep.subr.mxu0 0.0
        %479 = vmatpush1.msra.mxu0 0.0
        %480 = vmatprep.subr.mxu0 0.0
        %481 = vmatpush1.msra.mxu0 0.0
        %482 = vmatprep.subr.mxu0 0.0
        %483 = vmatpush1.msra.mxu0 0.0
        %484 = vmatprep.subr.mxu0 0.0
        %485 = vmatpush1.msra.mxu0 0.0
        %486 = vmatprep.subr.mxu0 0.0
        %487 = vmatpush1.msra.mxu0 0.0
        %488 = vmatprep.subr.mxu0 0.0
        %489 = vmatpush1.msra.mxu0 0.0
        %490 = vmatprep.subr.mxu0 0.0
        %491 = vmatpush1.msra.mxu0 0.0
        %492 = vmatprep.subr.mxu0 0.0
        %493 = vmatpush1.msra.mxu0 0.0
        %494 = vmatprep.subr.mxu0 0.0
        %495 = vmatpush1.msra.mxu0 0.0
        %496 = vmatprep.subr.mxu0 0.0
        %497 = vmatpush1.msra.mxu0 0.0
        %498 = vmatprep.subr.mxu0 0.0
        %499 = vmatpush1.msra.mxu0 0.0
        %500 = vmatprep.subr.mxu0 0.0
        %501 = vmatpush1.msra.mxu0 0.0
        %502 = vmatprep.subr.mxu0 0.0
        %503 = vmatpush1.msra.mxu0 0.0
        %504 = vmatprep.subr.mxu0 0.0
        %505 = vmatpush1.msra.mxu0 0.0
        %506 = vmatprep.subr.mxu0 0.0
        %507 = vmatpush1.msra.mxu0 0.0
        %508 = vmatprep.subr.mxu0 0.0
        %509 = vmatpush1.msra.mxu0 0.0
        %510 = vmatprep.subr.mxu0 0.0
        %511 = vmatpush1.msra.mxu0 0.0
        %512 = vmatprep.mubr.f32.mxu0 0.0
        %513 = vmatmul.mubr.f32.gmra.mrb[0].mxu0 %v439
        %v514 = vpop.f32.mrb[0].mxu0
        %v515 = vadd.f32 %v435, %v514
        %v516 = vpop.f32.mrb[0].mxu0
        %v517 = vadd.f32 %v435, %v516
        %518 = vdwg.mxu0
        %v519 = vadd.f32 %v515, %v517
        %520 = vadd.xlane.f32.xlu0 %v519
        %v521 = vpop.xlane.xlu0 %520
        %v522 = vrcp.pop 256.0
        %v523 = vmul.f32 %v521, %v522
        %v524 = vsub.f32 %v515, %v523
        %v525 = vsub.f32 %v517, %v523
        %v526 = vmul.f32 %v524, %v524
        %v527 = vmul.f32 %v525, %v525
        %v528 = vadd.f32 %v526, %v527
        %529 = vadd.xlane.f32.xlu0 %v528
        %v530 = vpop.xlane.xlu0 %529
        %v531 = vmul.f32 %v530, %v522
        %v532 = vadd.f32 %v531, 1e-05
        %v533 = vrsqrt.pop %v532
        %v534 = vmul.f32 %v524, %v533
        %v535 = vmul.f32 %v525, %v533
        %v536 = vmax.f32 %v534, 0.0
        %v537 = vmax.f32 %v535, 0.0
        %538 = vst [vmem:[%s186] sm:$0xff] %v536
        %539 = vst [vmem:[%s186 + $0x8] sm:$0xff] %v537
        %s540 = sand.u32 %s96, 1
        %s541 = scalar_lea.sflag [#allocation6], %s540
        %s542 = sand.u32 %s96, 1
        %s543 = smul.addr %s542, 16
        %s544 = scalar_lea.vmem [#allocation7], %s543
        // Predicated region
        $region37: #{tpu_custom_call.1} parent=31 // pred_check
          %p545 = pneg %p106
        $region38: #{tpu_custom_call.1} parent=31 // pred_check_branch
          %547 = sbr.rel (%p545) target = $region40
        $region39: #{tpu_custom_call.1} parent=31 // pred_region
          %s549 = ssub.s32 256, 256
          %550 = vsyncadd %s541, %s549
          %s551 = smul.addr %s20, 2
          %s552 = smul.addr %s551, 128
          %s553 = scalar_lea.hbm %s3, %s552
          %s555 = sshll.u32 %s544, 4
          %s556 = int_to_ptr.vmem [resolvable:$true] %s555
          %558 = dma.vmem_to_hbm [thread:$0]  %s556, 256, %s553, %s541
        $region40: #{tpu_custom_call.1} parent=31 // pred_fallthru
          _
      $region32: #{tpu_custom_call.1} parent=5 // pred_fallthru
        _
      %p559 = scmp.le.s32.totalorder 2, %s15
      // Predicated region
      $region41: #{tpu_custom_call.1} parent=5 // pred_check
        %p560 = pneg %p559
      $region42: #{tpu_custom_call.1} parent=5 // pred_check_branch
        %562 = sbr.rel (%p560) target = $region44
      $region43: #{tpu_custom_call.1} parent=5 // pred_region
        %s563 = ssub.s32 %s15, 2
        // Predicated region
        $region45: #{tpu_custom_call.1} parent=43 // pred_check
          %p564 = pneg %p112
        $region46: #{tpu_custom_call.1} parent=43 // pred_check_branch
          %566 = sbr.rel (%p564) target = $region48
        $region47: #{tpu_custom_call.1} parent=43 // pred_region
          %s567 = sand.u32 %s97, 1
          %s568 = scalar_lea.sflag [#allocation6], %s567
          %s569 = sand.u32 %s97, 1
          %s570 = smul.addr %s569, 16
          %s571 = scalar_lea.vmem [#allocation7], %s570
          %572 = dma.done %s568, 256
        $region48: #{tpu_custom_call.1} parent=43 // pred_fallthru
          _
      $region44: #{tpu_custom_call.1} parent=5 // pred_fallthru
        _
    $region6: #{tpu_custom_call.1} parent=1 // loop_footer
      %s19 = sadd.s32 1, %s15
    $region7: #{tpu_custom_call.1} parent=1 // loop_footer_branch
      %14 = sbr.rel target = $region3
    $region8: #{tpu_custom_call.1} parent=1 // loop_exit
      _
    %573 = vsyncpa [#allocation5], 1
    %s574 = scalar_lea.sflag [#allocation5], 1
    %575 = vsyncpa %s574, 1
    %576 = vsyncpa [#allocation6], 1
    %s577 = scalar_lea.sflag [#allocation6], 1
    %578 = vsyncpa %s577, 1

</llo_original>
